<compile_context>
chip_gen: v7x
topology: tpu7x:2x2x1
jax: 0.10.0
libtpu: 0.0.40
codegen_flags: <defaults>
</compile_context>

<pallas_src>
import jax
import jax.numpy as jnp
from jax.experimental import pallas as pl
from jax.experimental.pallas import tpu as pltpu


def _rnn_classifier_kernel(xw_ref,    # (L, Bp, D)  precomputed x@W_ih^T + (b_ih+b_hh)
                           whh_ref,   # (D, D)      W_hh^T
                           wcls_ref,  # (D, Cp)     W_classify^T, lane-padded
                           bcls_ref,  # (1, Cp)     classifier bias, lane-padded
                           out_ref):  # (Bp, Cp)    logits (padded)
    L = xw_ref.shape[0]

    # t = 0: h_prev is zero, so the h @ W_hh term vanishes.
    h = jnp.tanh(xw_ref[0])                                    # (Bp, D)

    # Remaining steps fully unrolled (L is static and small): one MXU matmul,
    # one VPU add, one EUP tanh per step on the serial critical path.
    for t in range(1, L):
        h = jnp.tanh(xw_ref[t]
                     + jnp.dot(h, whh_ref[...],
                               preferred_element_type=jnp.float32))

    logits = (jnp.dot(h, wcls_ref[...], preferred_element_type=jnp.float32)
              + bcls_ref[...])
    out_ref[...] = logits.astype(out_ref.dtype)                # unmasked, lane-dense store


def rnn_classifier_forward(x_tokens, params):
    """x_tokens: (B, L) int32 token ids.  Returns logits (B, sentence_length)."""
    emb = params["embedding"]            # (V, D), row 0 zeroed (padding_idx=0)
    B, L = x_tokens.shape
    D = emb.shape[1]
    C = params["b_cls"].shape[0]

    Bp = ((B + 7) // 8) * 8              # sublane-full batch
    Cp = ((C + 127) // 128) * 128        # lane-dense class dim

    # Time-major embedding gather (no explicit transpose of the activations),
    # then the full input projection as ONE well-shaped XLA matmul, with both
    # RNN biases folded in.
    x_lbd = jnp.take(emb, x_tokens.T, axis=0)                  # (L, B, D)
    bias = (params["b_ih"] + params["b_hh"]).reshape(1, 1, D)
    xw = jnp.einsum("lbd,hd->lbh", x_lbd, params["w_ih"],
                    preferred_element_type=jnp.float32) + bias  # (L, B, D)
    # Pad batch; padded rows are all-zero and stay zero through the recurrence.
    xw = jnp.pad(xw, ((0, 0), (0, Bp - B), (0, 0)))             # (L, Bp, D)

    whh_t = params["w_hh"].T                                    # (D, D)
    wcls_t = jnp.pad(params["w_cls"].T, ((0, 0), (0, Cp - C)))  # (D, Cp)
    bcls = jnp.pad(params["b_cls"], (0, Cp - C)).reshape(1, Cp)  # (1, Cp)

    vmem = pl.BlockSpec(memory_space=pltpu.MemorySpace.VMEM)
    logits_pad = pl.pallas_call(
        _rnn_classifier_kernel,
        out_shape=jax.ShapeDtypeStruct((Bp, Cp), jnp.float32),
        in_specs=[vmem] * 4,
        out_specs=vmem,
    )(xw, whh_t, wcls_t, bcls)

    return logits_pad[:B, :C]


def init_params(key, vocab_size, vector_dim, sentence_length):
    ks = jax.random.split(key, 7)
    scale = 0.1
    emb = scale * jax.random.normal(ks[0], (vocab_size, vector_dim), jnp.float32)
    emb = emb.at[0].set(0.0)  # padding_idx=0
    return {
        "embedding": emb,
        "w_ih": scale * jax.random.normal(ks[1], (vector_dim, vector_dim), jnp.float32),
        "w_hh": scale * jax.random.normal(ks[2], (vector_dim, vector_dim), jnp.float32),
        "b_ih": scale * jax.random.normal(ks[3], (vector_dim,), jnp.float32),
        "b_hh": scale * jax.random.normal(ks[4], (vector_dim,), jnp.float32),
        "w_cls": scale * jax.random.normal(ks[5], (sentence_length, vector_dim), jnp.float32),
        "b_cls": scale * jax.random.normal(ks[6], (sentence_length,), jnp.float32),
    }


def _reference_forward(x_tokens, params):
    """Pure-JAX reference matching torch.nn.RNN / nn.Linear semantics."""
    x = jnp.take(params["embedding"], x_tokens, axis=0)      # (B, L, D)
    B, L, D = x.shape
    h = jnp.zeros((B, D), jnp.float32)
    for t in range(L):
        h = jnp.tanh(x[:, t, :] @ params["w_ih"].T + params["b_ih"]
                     + h @ params["w_hh"].T + params["b_hh"])
    return h @ params["w_cls"].T + params["b_cls"]


if __name__ == "__main__":
    # Small shapes consistent with the module: vocab=16, vector_dim=32,
    # sentence_length(=seq len =num classes)=8, batch=2.
    VOCAB, DIM, SEQ, BATCH = 16, 32, 8, 2

    key = jax.random.PRNGKey(0)
    pkey, xkey = jax.random.split(key)
    params = init_params(pkey, VOCAB, DIM, SEQ)
    x_tokens = jax.random.randint(xkey, (BATCH, SEQ), 0, VOCAB, dtype=jnp.int32)

    logits = rnn_classifier_forward(x_tokens, params)
    logits = jax.block_until_ready(logits)

    ref = _reference_forward(x_tokens, params)
    assert logits.shape == (BATCH, SEQ)
    assert jnp.allclose(logits, ref, atol=1e-5, rtol=1e-5), "mismatch vs reference"

    # TODO(synk): CrossEntropyLoss branch (y is not None) is training-only glue;
    # only the inference logits path is implemented in the kernel.
    print("KERNEL_OK")
</pallas_src>

<mosaic_0001>
module attributes {stable_mosaic.version = 11 : i64} {
  func.func @_rnn_classifier_kernel(%arg0: memref<8x8x32xf32, #tpu.memory_space<vmem>>, %arg1: memref<32x32xf32, #tpu.memory_space<vmem>>, %arg2: memref<32x128xf32, #tpu.memory_space<vmem>>, %arg3: memref<1x128xf32, #tpu.memory_space<vmem>>, %arg4: memref<8x128xf32, #tpu.memory_space<vmem>>) attributes {dimension_semantics = [], scalar_prefetch = 0 : i64, scratch_operands = 0 : i64, tpu.core_type = #tpu.core_type<tc>} {
    %c0 = arith.constant 0 : index
    %c0_0 = arith.constant 0 : index
    %c0_1 = arith.constant 0 : index
    %0 = vector.load %arg0[%c0, %c0_0, %c0_1] : memref<8x8x32xf32, #tpu.memory_space<vmem>>, vector<1x8x32xf32>
    %1 = vector.shape_cast %0 : vector<1x8x32xf32> to vector<8x32xf32>
    %2 = math.tanh %1 : vector<8x32xf32>
    %c1 = arith.constant 1 : index
    %c0_2 = arith.constant 0 : index
    %c0_3 = arith.constant 0 : index
    %3 = vector.load %arg0[%c1, %c0_2, %c0_3] : memref<8x8x32xf32, #tpu.memory_space<vmem>>, vector<1x8x32xf32>
    %4 = vector.shape_cast %3 : vector<1x8x32xf32> to vector<8x32xf32>
    %c0_4 = arith.constant 0 : index
    %c0_5 = arith.constant 0 : index
    %5 = vector.load %arg1[%c0_4, %c0_5] : memref<32x32xf32, #tpu.memory_space<vmem>>, vector<32x32xf32>
    %cst = arith.constant dense<0.000000e+00> : vector<8x32xf32>
    %6 = tpu.matmul %2, %5, %cst {dimension_numbers = #tpu.dot_dimension_numbers<[1], [0], [0], [1], [0, 0, 1, 1], [], []>} : vector<8x32xf32>, vector<32x32xf32>, vector<8x32xf32> -> vector<8x32xf32>
    %7 = arith.addf %4, %6 : vector<8x32xf32>
    %8 = math.tanh %7 : vector<8x32xf32>
    %c2 = arith.constant 2 : index
    %c0_6 = arith.constant 0 : index
    %c0_7 = arith.constant 0 : index
    %9 = vector.load %arg0[%c2, %c0_6, %c0_7] : memref<8x8x32xf32, #tpu.memory_space<vmem>>, vector<1x8x32xf32>
    %10 = vector.shape_cast %9 : vector<1x8x32xf32> to vector<8x32xf32>
    %c0_8 = arith.constant 0 : index
    %c0_9 = arith.constant 0 : index
    %11 = vector.load %arg1[%c0_8, %c0_9] : memref<32x32xf32, #tpu.memory_space<vmem>>, vector<32x32xf32>
    %cst_10 = arith.constant dense<0.000000e+00> : vector<8x32xf32>
    %12 = tpu.matmul %8, %11, %cst_10 {dimension_numbers = #tpu.dot_dimension_numbers<[1], [0], [0], [1], [0, 0, 1, 1], [], []>} : vector<8x32xf32>, vector<32x32xf32>, vector<8x32xf32> -> vector<8x32xf32>
    %13 = arith.addf %10, %12 : vector<8x32xf32>
    %14 = math.tanh %13 : vector<8x32xf32>
    %c3 = arith.constant 3 : index
    %c0_11 = arith.constant 0 : index
    %c0_12 = arith.constant 0 : index
    %15 = vector.load %arg0[%c3, %c0_11, %c0_12] : memref<8x8x32xf32, #tpu.memory_space<vmem>>, vector<1x8x32xf32>
    %16 = vector.shape_cast %15 : vector<1x8x32xf32> to vector<8x32xf32>
    %c0_13 = arith.constant 0 : index
    %c0_14 = arith.constant 0 : index
    %17 = vector.load %arg1[%c0_13, %c0_14] : memref<32x32xf32, #tpu.memory_space<vmem>>, vector<32x32xf32>
    %cst_15 = arith.constant dense<0.000000e+00> : vector<8x32xf32>
    %18 = tpu.matmul %14, %17, %cst_15 {dimension_numbers = #tpu.dot_dimension_numbers<[1], [0], [0], [1], [0, 0, 1, 1], [], []>} : vector<8x32xf32>, vector<32x32xf32>, vector<8x32xf32> -> vector<8x32xf32>
    %19 = arith.addf %16, %18 : vector<8x32xf32>
    %20 = math.tanh %19 : vector<8x32xf32>
    %c4 = arith.constant 4 : index
    %c0_16 = arith.constant 0 : index
    %c0_17 = arith.constant 0 : index
    %21 = vector.load %arg0[%c4, %c0_16, %c0_17] : memref<8x8x32xf32, #tpu.memory_space<vmem>>, vector<1x8x32xf32>
    %22 = vector.shape_cast %21 : vector<1x8x32xf32> to vector<8x32xf32>
    %c0_18 = arith.constant 0 : index
    %c0_19 = arith.constant 0 : index
    %23 = vector.load %arg1[%c0_18, %c0_19] : memref<32x32xf32, #tpu.memory_space<vmem>>, vector<32x32xf32>
    %cst_20 = arith.constant dense<0.000000e+00> : vector<8x32xf32>
    %24 = tpu.matmul %20, %23, %cst_20 {dimension_numbers = #tpu.dot_dimension_numbers<[1], [0], [0], [1], [0, 0, 1, 1], [], []>} : vector<8x32xf32>, vector<32x32xf32>, vector<8x32xf32> -> vector<8x32xf32>
    %25 = arith.addf %22, %24 : vector<8x32xf32>
    %26 = math.tanh %25 : vector<8x32xf32>
    %c5 = arith.constant 5 : index
    %c0_21 = arith.constant 0 : index
    %c0_22 = arith.constant 0 : index
    %27 = vector.load %arg0[%c5, %c0_21, %c0_22] : memref<8x8x32xf32, #tpu.memory_space<vmem>>, vector<1x8x32xf32>
    %28 = vector.shape_cast %27 : vector<1x8x32xf32> to vector<8x32xf32>
    %c0_23 = arith.constant 0 : index
    %c0_24 = arith.constant 0 : index
    %29 = vector.load %arg1[%c0_23, %c0_24] : memref<32x32xf32, #tpu.memory_space<vmem>>, vector<32x32xf32>
    %cst_25 = arith.constant dense<0.000000e+00> : vector<8x32xf32>
    %30 = tpu.matmul %26, %29, %cst_25 {dimension_numbers = #tpu.dot_dimension_numbers<[1], [0], [0], [1], [0, 0, 1, 1], [], []>} : vector<8x32xf32>, vector<32x32xf32>, vector<8x32xf32> -> vector<8x32xf32>
    %31 = arith.addf %28, %30 : vector<8x32xf32>
    %32 = math.tanh %31 : vector<8x32xf32>
    %c6 = arith.constant 6 : index
    %c0_26 = arith.constant 0 : index
    %c0_27 = arith.constant 0 : index
    %33 = vector.load %arg0[%c6, %c0_26, %c0_27] : memref<8x8x32xf32, #tpu.memory_space<vmem>>, vector<1x8x32xf32>
    %34 = vector.shape_cast %33 : vector<1x8x32xf32> to vector<8x32xf32>
    %c0_28 = arith.constant 0 : index
    %c0_29 = arith.constant 0 : index
    %35 = vector.load %arg1[%c0_28, %c0_29] : memref<32x32xf32, #tpu.memory_space<vmem>>, vector<32x32xf32>
    %cst_30 = arith.constant dense<0.000000e+00> : vector<8x32xf32>
    %36 = tpu.matmul %32, %35, %cst_30 {dimension_numbers = #tpu.dot_dimension_numbers<[1], [0], [0], [1], [0, 0, 1, 1], [], []>} : vector<8x32xf32>, vector<32x32xf32>, vector<8x32xf32> -> vector<8x32xf32>
    %37 = arith.addf %34, %36 : vector<8x32xf32>
    %38 = math.tanh %37 : vector<8x32xf32>
    %c7 = arith.constant 7 : index
    %c0_31 = arith.constant 0 : index
    %c0_32 = arith.constant 0 : index
    %39 = vector.load %arg0[%c7, %c0_31, %c0_32] : memref<8x8x32xf32, #tpu.memory_space<vmem>>, vector<1x8x32xf32>
    %40 = vector.shape_cast %39 : vector<1x8x32xf32> to vector<8x32xf32>
    %c0_33 = arith.constant 0 : index
    %c0_34 = arith.constant 0 : index
    %41 = vector.load %arg1[%c0_33, %c0_34] : memref<32x32xf32, #tpu.memory_space<vmem>>, vector<32x32xf32>
    %cst_35 = arith.constant dense<0.000000e+00> : vector<8x32xf32>
    %42 = tpu.matmul %38, %41, %cst_35 {dimension_numbers = #tpu.dot_dimension_numbers<[1], [0], [0], [1], [0, 0, 1, 1], [], []>} : vector<8x32xf32>, vector<32x32xf32>, vector<8x32xf32> -> vector<8x32xf32>
    %43 = arith.addf %40, %42 : vector<8x32xf32>
    %44 = math.tanh %43 : vector<8x32xf32>
    %c0_36 = arith.constant 0 : index
    %c0_37 = arith.constant 0 : index
    %45 = vector.load %arg2[%c0_36, %c0_37] : memref<32x128xf32, #tpu.memory_space<vmem>>, vector<32x128xf32>
    %cst_38 = arith.constant dense<0.000000e+00> : vector<8x128xf32>
    %46 = tpu.matmul %44, %45, %cst_38 {dimension_numbers = #tpu.dot_dimension_numbers<[1], [0], [0], [1], [0, 0, 1, 1], [], []>} : vector<8x32xf32>, vector<32x128xf32>, vector<8x128xf32> -> vector<8x128xf32>
    %c0_39 = arith.constant 0 : index
    %c0_40 = arith.constant 0 : index
    %47 = vector.load %arg3[%c0_39, %c0_40] : memref<1x128xf32, #tpu.memory_space<vmem>>, vector<1x128xf32>
    %48 = vector.broadcast %47 : vector<1x128xf32> to vector<8x128xf32>
    %49 = arith.addf %46, %48 : vector<8x128xf32>
    %c0_41 = arith.constant 0 : index
    %c0_42 = arith.constant 0 : index
    %50 = vector.load %arg4[%c0_41, %c0_42] : memref<8x128xf32, #tpu.memory_space<vmem>>, vector<8x128xf32>
    tpu.vector_store %arg4[%c0_41, %c0_42], %49 {strides = array<i32>} : memref<8x128xf32, #tpu.memory_space<vmem>>, vector<8x128xf32>,
    return
  }
}

</mosaic_0001>

<llo_original>
// kernel: tpu_custom_call.1
$region0: #{tpu_custom_call.1}
  #allocation0 [shape = 'u32[]', space=smem, size = 0x4, offset = 0x4, fixed_abs, tag = 'smem constant byte address 0x4 - core index']
  #allocation1 [shape = 'u32[144,128]{1,0:T(1,128)}', space=vmem, size = 0x12000, scoped, tag = 'internal scratch']
  %s0 = inlined_call_operand.hbm [shape: f32[8,8,32], index: 0, kind: input, shape index: {}]
  %s1 = inlined_call_operand.hbm [shape: f32[32,32], index: 1, kind: input, shape index: {}]
  %s2 = inlined_call_operand.hbm [shape: f32[32,128], index: 2, kind: input, shape index: {}]
  %s3 = inlined_call_operand.vmem [shape: f32[1,128], index: 3, kind: input, shape index: {}]
  %s4 = inlined_call_operand.hbm [shape: f32[8,128], index: 4, kind: output, shape index: {}]
  %s5 = sld [smem:[#allocation0]]
  $region38: #{tpu_custom_call.1} parent=0
    _
  %s7 = ssub.s32 1, %s5
  %s8 = scalar_select 0, %s7, %s5
  $region1: #{tpu_custom_call.1} parent=0
    #allocation2 [shape = 'u8[32768]{0}', space=vmem, size = 0x8000, scoped, tag = 'input window, operand 0, single buffered']
    #allocation3 [shape = 's32[1]{0}', space=sflag, size = 0x4, scoped, tag = 'scoped memory for tpu_custom_call.1']
    #allocation4 [shape = 's32[1]{0}', space=sflag, size = 0x4, scoped, tag = 'scoped memory for tpu_custom_call.1']
    #allocation5 [shape = 'u8[16384]{0}', space=vmem, size = 0x4000, scoped, tag = 'input window, operand 1, single buffered']
    #allocation6 [shape = 's32[1]{0}', space=sflag, size = 0x4, scoped, tag = 'scoped memory for tpu_custom_call.1']
    #allocation7 [shape = 'u8[16384]{0}', space=vmem, size = 0x4000, scoped, tag = 'input window, operand 2, single buffered']
    #allocation8 [shape = 'u8[4096]{0}', space=vmem, size = 0x1000, scoped, tag = 'output window, operand 0, single buffered']
    %9 = vsyncpa [#allocation3], 0
    %10 = vsyncpa [#allocation6], 0
    %11 = vsyncpa [#allocation4], 0
    // Predicated region
    $region2: #{tpu_custom_call.1} parent=1 // pred_check
      _
    $region3: #{tpu_custom_call.1} parent=1 // pred_check_branch
      %13 = sbr.rel (0) target = $region5
    $region4: #{tpu_custom_call.1} parent=1 // pred_region
      %s15 = ssub.s32 1024, 1024
      %16 = vsyncadd [#allocation3], %s15
      %s17 = sshll.u32 [#allocation2], 4
      %s18 = int_to_ptr.vmem [resolvable:$true] %s17
      %23 = dma.hbm_to_vmem [thread:$0]  %s0, 1024, %s18, [#allocation3], 128, 128, 8
    $region5: #{tpu_custom_call.1} parent=1 // pred_fallthru
      _
    // Predicated region
    $region6: #{tpu_custom_call.1} parent=1 // pred_check
      _
    $region7: #{tpu_custom_call.1} parent=1 // pred_check_branch
      %25 = sbr.rel (0) target = $region9
    $region8: #{tpu_custom_call.1} parent=1 // pred_region
      %s27 = ssub.s32 512, 512
      %28 = vsyncadd [#allocation6], %s27
      %s29 = sshll.u32 [#allocation5], 4
      %s30 = int_to_ptr.vmem [resolvable:$true] %s29
      %35 = dma.hbm_to_vmem [thread:$0]  %s1, 512, %s30, [#allocation6], 128, 128, 8
    $region9: #{tpu_custom_call.1} parent=1 // pred_fallthru
      _
    // Predicated region
    $region10: #{tpu_custom_call.1} parent=1 // pred_check
      _
    $region11: #{tpu_custom_call.1} parent=1 // pred_check_branch
      %37 = sbr.rel (0) target = $region13
    $region12: #{tpu_custom_call.1} parent=1 // pred_region
      %s39 = ssub.s32 512, 512
      %40 = vsyncadd [#allocation6], %s39
      %s41 = sshll.u32 [#allocation7], 4
      %s42 = int_to_ptr.vmem [resolvable:$true] %s41
      %47 = dma.hbm_to_vmem [thread:$0]  %s2, 512, %s42, [#allocation6], 128, 128, 8
    $region13: #{tpu_custom_call.1} parent=1 // pred_fallthru
      _
    // Predicated region
    $region14: #{tpu_custom_call.1} parent=1 // pred_check
      _
    $region15: #{tpu_custom_call.1} parent=1 // pred_check_branch
      %49 = sbr.rel (0) target = $region17
    $region16: #{tpu_custom_call.1} parent=1 // pred_region
      _
    $region17: #{tpu_custom_call.1} parent=1 // pred_fallthru
      _
    // Predicated region
    $region18: #{tpu_custom_call.1} parent=1 // pred_check
      _
    $region19: #{tpu_custom_call.1} parent=1 // pred_check_branch
      %51 = sbr.rel (0) target = $region21
    $region20: #{tpu_custom_call.1} parent=1 // pred_region
      %52 = dma.done [#allocation3], 1024
    $region21: #{tpu_custom_call.1} parent=1 // pred_fallthru
      _
    // Predicated region
    $region22: #{tpu_custom_call.1} parent=1 // pred_check
      _
    $region23: #{tpu_custom_call.1} parent=1 // pred_check_branch
      %54 = sbr.rel (0) target = $region25
    $region24: #{tpu_custom_call.1} parent=1 // pred_region
      %55 = dma.done [#allocation6], 512
    $region25: #{tpu_custom_call.1} parent=1 // pred_fallthru
      _
    // Predicated region
    $region26: #{tpu_custom_call.1} parent=1 // pred_check
      _
    $region27: #{tpu_custom_call.1} parent=1 // pred_check_branch
      %57 = sbr.rel (0) target = $region29
    $region28: #{tpu_custom_call.1} parent=1 // pred_region
      %58 = dma.done [#allocation6], 512
    $region29: #{tpu_custom_call.1} parent=1 // pred_fallthru
      _
    %v59 = vld [vmem:[#allocation2] sm:$0xff]
    %v60 = vtanh.pop %v59
    %s61 = scalar_lea.vmem [#allocation2], 8
    %v62 = vld [vmem:[%s61] sm:$0xff]
    %v63 = vld [vmem:[#allocation5] sm:$0xff]
    %v64 = vld [vmem:[#allocation5 + $0x8] sm:$0xff]
    %v65 = vld [vmem:[#allocation5 + $0x10] sm:$0xff]
    %v66 = vld [vmem:[#allocation5 + $0x18] sm:$0xff]
    %vm67 = vcmask 261120
    %v69 = vsel %vm67, %v60, 0
    %71 = vmatprep.subr.mxu0 0.0
    %72 = vmatpush1.msra.mxu0 %v63
    %73 = vmatprep.subr.mxu0 0.0
    %74 = vmatpush1.msra.mxu0 %v64
    %75 = vmatprep.subr.mxu0 0.0
    %76 = vmatpush1.msra.mxu0 %v65
    %77 = vmatprep.subr.mxu0 0.0
    %78 = vmatpush1.msra.mxu0 %v66
    %79 = vmatprep.subr.mxu0 0.0
    %80 = vmatpush1.msra.mxu0 0.0
    %81 = vmatprep.subr.mxu0 0.0
    %82 = vmatpush1.msra.mxu0 0.0
    %83 = vmatprep.subr.mxu0 0.0
    %84 = vmatpush1.msra.mxu0 0.0
    %85 = vmatprep.subr.mxu0 0.0
    %86 = vmatpush1.msra.mxu0 0.0
    %87 = vmatprep.subr.mxu0 0.0
    %88 = vmatpush1.msra.mxu0 0.0
    %89 = vmatprep.subr.mxu0 0.0
    %90 = vmatpush1.msra.mxu0 0.0
    %91 = vmatprep.subr.mxu0 0.0
    %92 = vmatpush1.msra.mxu0 0.0
    %93 = vmatprep.subr.mxu0 0.0
    %94 = vmatpush1.msra.mxu0 0.0
    %95 = vmatprep.subr.mxu0 0.0
    %96 = vmatpush1.msra.mxu0 0.0
    %97 = vmatprep.subr.mxu0 0.0
    %98 = vmatpush1.msra.mxu0 0.0
    %99 = vmatprep.subr.mxu0 0.0
    %100 = vmatpush1.msra.mxu0 0.0
    %101 = vmatprep.subr.mxu0 0.0
    %102 = vmatpush1.msra.mxu0 0.0
    %103 = vmatprep.subr.mxu0 0.0
    %104 = vmatpush1.msra.mxu0 0.0
    %105 = vmatprep.subr.mxu0 0.0
    %106 = vmatpush1.msra.mxu0 0.0
    %107 = vmatprep.subr.mxu0 0.0
    %108 = vmatpush1.msra.mxu0 0.0
    %109 = vmatprep.subr.mxu0 0.0
    %110 = vmatpush1.msra.mxu0 0.0
    %111 = vmatprep.subr.mxu0 0.0
    %112 = vmatpush1.msra.mxu0 0.0
    %113 = vmatprep.subr.mxu0 0.0
    %114 = vmatpush1.msra.mxu0 0.0
    %115 = vmatprep.subr.mxu0 0.0
    %116 = vmatpush1.msra.mxu0 0.0
    %117 = vmatprep.subr.mxu0 0.0
    %118 = vmatpush1.msra.mxu0 0.0
    %119 = vmatprep.subr.mxu0 0.0
    %120 = vmatpush1.msra.mxu0 0.0
    %121 = vmatprep.subr.mxu0 0.0
    %122 = vmatpush1.msra.mxu0 0.0
    %123 = vmatprep.subr.mxu0 0.0
    %124 = vmatpush1.msra.mxu0 0.0
    %125 = vmatprep.subr.mxu0 0.0
    %126 = vmatpush1.msra.mxu0 0.0
    %127 = vmatprep.subr.mxu0 0.0
    %128 = vmatpush1.msra.mxu0 0.0
    %129 = vmatprep.subr.mxu0 0.0
    %130 = vmatpush1.msra.mxu0 0.0
    %131 = vmatprep.subr.mxu0 0.0
    %132 = vmatpush1.msra.mxu0 0.0
    %133 = vmatprep.subr.mxu0 0.0
    %134 = vmatpush1.msra.mxu0 0.0
    %135 = vmatprep.mubr.f32.mxu0 0.0
    %136 = vmatmul.mubr.f32.gmra.mrb[0].mxu0 %v69
    %v137 = vpop.f32.mrb[0].mxu0
    %v138 = vadd.f32 0.0, %v137
    %v139 = vpop.f32.mrb[0].mxu0
    %140 = vdwg.mxu0
    %v141 = vadd.f32 %v62, %v138
    %v142 = vtanh.pop %v141
    %s143 = scalar_lea.vmem [#allocation2], 16
    %v144 = vld [vmem:[%s143] sm:$0xff]
    %v146 = vsel %vm67, %v142, 0
    %148 = vmatprep.subr.mxu0 0.0
    %149 = vmatpush1.msra.mxu0 %v63
    %150 = vmatprep.subr.mxu0 0.0
    %151 = vmatpush1.msra.mxu0 %v64
    %152 = vmatprep.subr.mxu0 0.0
    %153 = vmatpush1.msra.mxu0 %v65
    %154 = vmatprep.subr.mxu0 0.0
    %155 = vmatpush1.msra.mxu0 %v66
    %156 = vmatprep.subr.mxu0 0.0
    %157 = vmatpush1.msra.mxu0 0.0
    %158 = vmatprep.subr.mxu0 0.0
    %159 = vmatpush1.msra.mxu0 0.0
    %160 = vmatprep.subr.mxu0 0.0
    %161 = vmatpush1.msra.mxu0 0.0
    %162 = vmatprep.subr.mxu0 0.0
    %163 = vmatpush1.msra.mxu0 0.0
    %164 = vmatprep.subr.mxu0 0.0
    %165 = vmatpush1.msra.mxu0 0.0
    %166 = vmatprep.subr.mxu0 0.0
    %167 = vmatpush1.msra.mxu0 0.0
    %168 = vmatprep.subr.mxu0 0.0
    %169 = vmatpush1.msra.mxu0 0.0
    %170 = vmatprep.subr.mxu0 0.0
    %171 = vmatpush1.msra.mxu0 0.0
    %172 = vmatprep.subr.mxu0 0.0
    %173 = vmatpush1.msra.mxu0 0.0
    %174 = vmatprep.subr.mxu0 0.0
    %175 = vmatpush1.msra.mxu0 0.0
    %176 = vmatprep.subr.mxu0 0.0
    %177 = vmatpush1.msra.mxu0 0.0
    %178 = vmatprep.subr.mxu0 0.0
    %179 = vmatpush1.msra.mxu0 0.0
    %180 = vmatprep.subr.mxu0 0.0
    %181 = vmatpush1.msra.mxu0 0.0
    %182 = vmatprep.subr.mxu0 0.0
    %183 = vmatpush1.msra.mxu0 0.0
    %184 = vmatprep.subr.mxu0 0.0
    %185 = vmatpush1.msra.mxu0 0.0
    %186 = vmatprep.subr.mxu0 0.0
    %187 = vmatpush1.msra.mxu0 0.0
    %188 = vmatprep.subr.mxu0 0.0
    %189 = vmatpush1.msra.mxu0 0.0
    %190 = vmatprep.subr.mxu0 0.0
    %191 = vmatpush1.msra.mxu0 0.0
    %192 = vmatprep.subr.mxu0 0.0
    %193 = vmatpush1.msra.mxu0 0.0
    %194 = vmatprep.subr.mxu0 0.0
    %195 = vmatpush1.msra.mxu0 0.0
    %196 = vmatprep.subr.mxu0 0.0
    %197 = vmatpush1.msra.mxu0 0.0
    %198 = vmatprep.subr.mxu0 0.0
    %199 = vmatpush1.msra.mxu0 0.0
    %200 = vmatprep.subr.mxu0 0.0
    %201 = vmatpush1.msra.mxu0 0.0
    %202 = vmatprep.subr.mxu0 0.0
    %203 = vmatpush1.msra.mxu0 0.0
    %204 = vmatprep.subr.mxu0 0.0
    %205 = vmatpush1.msra.mxu0 0.0
    %206 = vmatprep.subr.mxu0 0.0
    %207 = vmatpush1.msra.mxu0 0.0
    %208 = vmatprep.subr.mxu0 0.0
    %209 = vmatpush1.msra.mxu0 0.0
    %210 = vmatprep.subr.mxu0 0.0
    %211 = vmatpush1.msra.mxu0 0.0
    %212 = vmatprep.mubr.f32.mxu0 0.0
    %213 = vmatmul.mubr.f32.gmra.mrb[0].mxu0 %v146
    %v214 = vpop.f32.mrb[0].mxu0
    %v215 = vadd.f32 0.0, %v214
    %v216 = vpop.f32.mrb[0].mxu0
    %217 = vdwg.mxu0
    %v218 = vadd.f32 %v144, %v215
    %v219 = vtanh.pop %v218
    %s220 = scalar_lea.vmem [#allocation2], 24
    %v221 = vld [vmem:[%s220] sm:$0xff]
    %v223 = vsel %vm67, %v219, 0
    %225 = vmatprep.subr.mxu0 0.0
    %226 = vmatpush1.msra.mxu0 %v63
    %227 = vmatprep.subr.mxu0 0.0
    %228 = vmatpush1.msra.mxu0 %v64
    %229 = vmatprep.subr.mxu0 0.0
    %230 = vmatpush1.msra.mxu0 %v65
    %231 = vmatprep.subr.mxu0 0.0
    %232 = vmatpush1.msra.mxu0 %v66
    %233 = vmatprep.subr.mxu0 0.0
    %234 = vmatpush1.msra.mxu0 0.0
    %235 = vmatprep.subr.mxu0 0.0
    %236 = vmatpush1.msra.mxu0 0.0
    %237 = vmatprep.subr.mxu0 0.0
    %238 = vmatpush1.msra.mxu0 0.0
    %239 = vmatprep.subr.mxu0 0.0
    %240 = vmatpush1.msra.mxu0 0.0
    %241 = vmatprep.subr.mxu0 0.0
    %242 = vmatpush1.msra.mxu0 0.0
    %243 = vmatprep.subr.mxu0 0.0
    %244 = vmatpush1.msra.mxu0 0.0
    %245 = vmatprep.subr.mxu0 0.0
    %246 = vmatpush1.msra.mxu0 0.0
    %247 = vmatprep.subr.mxu0 0.0
    %248 = vmatpush1.msra.mxu0 0.0
    %249 = vmatprep.subr.mxu0 0.0
    %250 = vmatpush1.msra.mxu0 0.0
    %251 = vmatprep.subr.mxu0 0.0
    %252 = vmatpush1.msra.mxu0 0.0
    %253 = vmatprep.subr.mxu0 0.0
    %254 = vmatpush1.msra.mxu0 0.0
    %255 = vmatprep.subr.mxu0 0.0
    %256 = vmatpush1.msra.mxu0 0.0
    %257 = vmatprep.subr.mxu0 0.0
    %258 = vmatpush1.msra.mxu0 0.0
    %259 = vmatprep.subr.mxu0 0.0
    %260 = vmatpush1.msra.mxu0 0.0
    %261 = vmatprep.subr.mxu0 0.0
    %262 = vmatpush1.msra.mxu0 0.0
    %263 = vmatprep.subr.mxu0 0.0
    %264 = vmatpush1.msra.mxu0 0.0
    %265 = vmatprep.subr.mxu0 0.0
    %266 = vmatpush1.msra.mxu0 0.0
    %267 = vmatprep.subr.mxu0 0.0
    %268 = vmatpush1.msra.mxu0 0.0
    %269 = vmatprep.subr.mxu0 0.0
    %270 = vmatpush1.msra.mxu0 0.0
    %271 = vmatprep.subr.mxu0 0.0
    %272 = vmatpush1.msra.mxu0 0.0
    %273 = vmatprep.subr.mxu0 0.0
    %274 = vmatpush1.msra.mxu0 0.0
    %275 = vmatprep.subr.mxu0 0.0
    %276 = vmatpush1.msra.mxu0 0.0
    %277 = vmatprep.subr.mxu0 0.0
    %278 = vmatpush1.msra.mxu0 0.0
    %279 = vmatprep.subr.mxu0 0.0
    %280 = vmatpush1.msra.mxu0 0.0
    %281 = vmatprep.subr.mxu0 0.0
    %282 = vmatpush1.msra.mxu0 0.0
    %283 = vmatprep.subr.mxu0 0.0
    %284 = vmatpush1.msra.mxu0 0.0
    %285 = vmatprep.subr.mxu0 0.0
    %286 = vmatpush1.msra.mxu0 0.0
    %287 = vmatprep.subr.mxu0 0.0
    %288 = vmatpush1.msra.mxu0 0.0
    %289 = vmatprep.mubr.f32.mxu0 0.0
    %290 = vmatmul.mubr.f32.gmra.mrb[0].mxu0 %v223
    %v291 = vpop.f32.mrb[0].mxu0
    %v292 = vadd.f32 0.0, %v291
    %v293 = vpop.f32.mrb[0].mxu0
    %294 = vdwg.mxu0
    %v295 = vadd.f32 %v221, %v292
    %v296 = vtanh.pop %v295
    %s297 = scalar_lea.vmem [#allocation2], 32
    %v298 = vld [vmem:[%s297] sm:$0xff]
    %v300 = vsel %vm67, %v296, 0
    %302 = vmatprep.subr.mxu0 0.0
    %303 = vmatpush1.msra.mxu0 %v63
    %304 = vmatprep.subr.mxu0 0.0
    %305 = vmatpush1.msra.mxu0 %v64
    %306 = vmatprep.subr.mxu0 0.0
    %307 = vmatpush1.msra.mxu0 %v65
    %308 = vmatprep.subr.mxu0 0.0
    %309 = vmatpush1.msra.mxu0 %v66
    %310 = vmatprep.subr.mxu0 0.0
    %311 = vmatpush1.msra.mxu0 0.0
    %312 = vmatprep.subr.mxu0 0.0
    %313 = vmatpush1.msra.mxu0 0.0
    %314 = vmatprep.subr.mxu0 0.0
    %315 = vmatpush1.msra.mxu0 0.0
    %316 = vmatprep.subr.mxu0 0.0
    %317 = vmatpush1.msra.mxu0 0.0
    %318 = vmatprep.subr.mxu0 0.0
    %319 = vmatpush1.msra.mxu0 0.0
    %320 = vmatprep.subr.mxu0 0.0
    %321 = vmatpush1.msra.mxu0 0.0
    %322 = vmatprep.subr.mxu0 0.0
    %323 = vmatpush1.msra.mxu0 0.0
    %324 = vmatprep.subr.mxu0 0.0
    %325 = vmatpush1.msra.mxu0 0.0
    %326 = vmatprep.subr.mxu0 0.0
    %327 = vmatpush1.msra.mxu0 0.0
    %328 = vmatprep.subr.mxu0 0.0
    %329 = vmatpush1.msra.mxu0 0.0
    %330 = vmatprep.subr.mxu0 0.0
    %331 = vmatpush1.msra.mxu0 0.0
    %332 = vmatprep.subr.mxu0 0.0
    %333 = vmatpush1.msra.mxu0 0.0
    %334 = vmatprep.subr.mxu0 0.0
    %335 = vmatpush1.msra.mxu0 0.0
    %336 = vmatprep.subr.mxu0 0.0
    %337 = vmatpush1.msra.mxu0 0.0
    %338 = vmatprep.subr.mxu0 0.0
    %339 = vmatpush1.msra.mxu0 0.0
    %340 = vmatprep.subr.mxu0 0.0
    %341 = vmatpush1.msra.mxu0 0.0
    %342 = vmatprep.subr.mxu0 0.0
    %343 = vmatpush1.msra.mxu0 0.0
    %344 = vmatprep.subr.mxu0 0.0
    %345 = vmatpush1.msra.mxu0 0.0
    %346 = vmatprep.subr.mxu0 0.0
    %347 = vmatpush1.msra.mxu0 0.0
    %348 = vmatprep.subr.mxu0 0.0
    %349 = vmatpush1.msra.mxu0 0.0
    %350 = vmatprep.subr.mxu0 0.0
    %351 = vmatpush1.msra.mxu0 0.0
    %352 = vmatprep.subr.mxu0 0.0
    %353 = vmatpush1.msra.mxu0 0.0
    %354 = vmatprep.subr.mxu0 0.0
    %355 = vmatpush1.msra.mxu0 0.0
    %356 = vmatprep.subr.mxu0 0.0
    %357 = vmatpush1.msra.mxu0 0.0
    %358 = vmatprep.subr.mxu0 0.0
    %359 = vmatpush1.msra.mxu0 0.0
    %360 = vmatprep.subr.mxu0 0.0
    %361 = vmatpush1.msra.mxu0 0.0
    %362 = vmatprep.subr.mxu0 0.0
    %363 = vmatpush1.msra.mxu0 0.0
    %364 = vmatprep.subr.mxu0 0.0
    %365 = vmatpush1.msra.mxu0 0.0
    %366 = vmatprep.mubr.f32.mxu0 0.0
    %367 = vmatmul.mubr.f32.gmra.mrb[0].mxu0 %v300
    %v368 = vpop.f32.mrb[0].mxu0
    %v369 = vadd.f32 0.0, %v368
    %v370 = vpop.f32.mrb[0].mxu0
    %371 = vdwg.mxu0
    %v372 = vadd.f32 %v298, %v369
    %v373 = vtanh.pop %v372
    %s374 = scalar_lea.vmem [#allocation2], 40
    %v375 = vld [vmem:[%s374] sm:$0xff]
    %v377 = vsel %vm67, %v373, 0
    %379 = vmatprep.subr.mxu0 0.0
    %380 = vmatpush1.msra.mxu0 %v63
    %381 = vmatprep.subr.mxu0 0.0
    %382 = vmatpush1.msra.mxu0 %v64
    %383 = vmatprep.subr.mxu0 0.0
    %384 = vmatpush1.msra.mxu0 %v65
    %385 = vmatprep.subr.mxu0 0.0
    %386 = vmatpush1.msra.mxu0 %v66
    %387 = vmatprep.subr.mxu0 0.0
    %388 = vmatpush1.msra.mxu0 0.0
    %389 = vmatprep.subr.mxu0 0.0
    %390 = vmatpush1.msra.mxu0 0.0
    %391 = vmatprep.subr.mxu0 0.0
    %392 = vmatpush1.msra.mxu0 0.0
    %393 = vmatprep.subr.mxu0 0.0
    %394 = vmatpush1.msra.mxu0 0.0
    %395 = vmatprep.subr.mxu0 0.0
    %396 = vmatpush1.msra.mxu0 0.0
    %397 = vmatprep.subr.mxu0 0.0
    %398 = vmatpush1.msra.mxu0 0.0
    %399 = vmatprep.subr.mxu0 0.0
    %400 = vmatpush1.msra.mxu0 0.0
    %401 = vmatprep.subr.mxu0 0.0
    %402 = vmatpush1.msra.mxu0 0.0
    %403 = vmatprep.subr.mxu0 0.0
    %404 = vmatpush1.msra.mxu0 0.0
    %405 = vmatprep.subr.mxu0 0.0
    %406 = vmatpush1.msra.mxu0 0.0
    %407 = vmatprep.subr.mxu0 0.0
    %408 = vmatpush1.msra.mxu0 0.0
    %409 = vmatprep.subr.mxu0 0.0
    %410 = vmatpush1.msra.mxu0 0.0
    %411 = vmatprep.subr.mxu0 0.0
    %412 = vmatpush1.msra.mxu0 0.0
    %413 = vmatprep.subr.mxu0 0.0
    %414 = vmatpush1.msra.mxu0 0.0
    %415 = vmatprep.subr.mxu0 0.0
    %416 = vmatpush1.msra.mxu0 0.0
    %417 = vmatprep.subr.mxu0 0.0
    %418 = vmatpush1.msra.mxu0 0.0
    %419 = vmatprep.subr.mxu0 0.0
    %420 = vmatpush1.msra.mxu0 0.0
    %421 = vmatprep.subr.mxu0 0.0
    %422 = vmatpush1.msra.mxu0 0.0
    %423 = vmatprep.subr.mxu0 0.0
    %424 = vmatpush1.msra.mxu0 0.0
    %425 = vmatprep.subr.mxu0 0.0
    %426 = vmatpush1.msra.mxu0 0.0
    %427 = vmatprep.subr.mxu0 0.0
    %428 = vmatpush1.msra.mxu0 0.0
    %429 = vmatprep.subr.mxu0 0.0
    %430 = vmatpush1.msra.mxu0 0.0
    %431 = vmatprep.subr.mxu0 0.0
    %432 = vmatpush1.msra.mxu0 0.0
    %433 = vmatprep.subr.mxu0 0.0
    %434 = vmatpush1.msra.mxu0 0.0
    %435 = vmatprep.subr.mxu0 0.0
    %436 = vmatpush1.msra.mxu0 0.0
    %437 = vmatprep.subr.mxu0 0.0
    %438 = vmatpush1.msra.mxu0 0.0
    %439 = vmatprep.subr.mxu0 0.0
    %440 = vmatpush1.msra.mxu0 0.0
    %441 = vmatprep.subr.mxu0 0.0
    %442 = vmatpush1.msra.mxu0 0.0
    %443 = vmatprep.mubr.f32.mxu0 0.0
    %444 = vmatmul.mubr.f32.gmra.mrb[0].mxu0 %v377
    %v445 = vpop.f32.mrb[0].mxu0
    %v446 = vadd.f32 0.0, %v445
    %v447 = vpop.f32.mrb[0].mxu0
    %448 = vdwg.mxu0
    %v449 = vadd.f32 %v375, %v446
    %v450 = vtanh.pop %v449
    %s451 = scalar_lea.vmem [#allocation2], 48
    %v452 = vld [vmem:[%s451] sm:$0xff]
    %v454 = vsel %vm67, %v450, 0
    %456 = vmatprep.subr.mxu0 0.0
    %457 = vmatpush1.msra.mxu0 %v63
    %458 = vmatprep.subr.mxu0 0.0
    %459 = vmatpush1.msra.mxu0 %v64
    %460 = vmatprep.subr.mxu0 0.0
    %461 = vmatpush1.msra.mxu0 %v65
    %462 = vmatprep.subr.mxu0 0.0
    %463 = vmatpush1.msra.mxu0 %v66
    %464 = vmatprep.subr.mxu0 0.0
    %465 = vmatpush1.msra.mxu0 0.0
    %466 = vmatprep.subr.mxu0 0.0
    %467 = vmatpush1.msra.mxu0 0.0
    %468 = vmatprep.subr.mxu0 0.0
    %469 = vmatpush1.msra.mxu0 0.0
    %470 = vmatprep.subr.mxu0 0.0
    %471 = vmatpush1.msra.mxu0 0.0
    %472 = vmatprep.subr.mxu0 0.0
    %473 = vmatpush1.msra.mxu0 0.0
    %474 = vmatprep.subr.mxu0 0.0
    %475 = vmatpush1.msra.mxu0 0.0
    %476 = vmatprep.subr.mxu0 0.0
    %477 = vmatpush1.msra.mxu0 0.0
    %478 = vmatprep.subr.mxu0 0.0
    %479 = vmatpush1.msra.mxu0 0.0
    %480 = vmatprep.subr.mxu0 0.0
    %481 = vmatpush1.msra.mxu0 0.0
    %482 = vmatprep.subr.mxu0 0.0
    %483 = vmatpush1.msra.mxu0 0.0
    %484 = vmatprep.subr.mxu0 0.0
    %485 = vmatpush1.msra.mxu0 0.0
    %486 = vmatprep.subr.mxu0 0.0
    %487 = vmatpush1.msra.mxu0 0.0
    %488 = vmatprep.subr.mxu0 0.0
    %489 = vmatpush1.msra.mxu0 0.0
    %490 = vmatprep.subr.mxu0 0.0
    %491 = vmatpush1.msra.mxu0 0.0
    %492 = vmatprep.subr.mxu0 0.0
    %493 = vmatpush1.msra.mxu0 0.0
    %494 = vmatprep.subr.mxu0 0.0
    %495 = vmatpush1.msra.mxu0 0.0
    %496 = vmatprep.subr.mxu0 0.0
    %497 = vmatpush1.msra.mxu0 0.0
    %498 = vmatprep.subr.mxu0 0.0
    %499 = vmatpush1.msra.mxu0 0.0
    %500 = vmatprep.subr.mxu0 0.0
    %501 = vmatpush1.msra.mxu0 0.0
    %502 = vmatprep.subr.mxu0 0.0
    %503 = vmatpush1.msra.mxu0 0.0
    %504 = vmatprep.subr.mxu0 0.0
    %505 = vmatpush1.msra.mxu0 0.0
    %506 = vmatprep.subr.mxu0 0.0
    %507 = vmatpush1.msra.mxu0 0.0
    %508 = vmatprep.subr.mxu0 0.0
    %509 = vmatpush1.msra.mxu0 0.0
    %510 = vmatprep.subr.mxu0 0.0
    %511 = vmatpush1.msra.mxu0 0.0
    %512 = vmatprep.subr.mxu0 0.0
    %513 = vmatpush1.msra.mxu0 0.0
    %514 = vmatprep.subr.mxu0 0.0
    %515 = vmatpush1.msra.mxu0 0.0
    %516 = vmatprep.subr.mxu0 0.0
    %517 = vmatpush1.msra.mxu0 0.0
    %518 = vmatprep.subr.mxu0 0.0
    %519 = vmatpush1.msra.mxu0 0.0
    %520 = vmatprep.mubr.f32.mxu0 0.0
    %521 = vmatmul.mubr.f32.gmra.mrb[0].mxu0 %v454
    %v522 = vpop.f32.mrb[0].mxu0
    %v523 = vadd.f32 0.0, %v522
    %v524 = vpop.f32.mrb[0].mxu0
    %525 = vdwg.mxu0
    %v526 = vadd.f32 %v452, %v523
    %v527 = vtanh.pop %v526
    %s528 = scalar_lea.vmem [#allocation2], 56
    %v529 = vld [vmem:[%s528] sm:$0xff]
    %v531 = vsel %vm67, %v527, 0
    %533 = vmatprep.subr.mxu0 0.0
    %534 = vmatpush1.msra.mxu0 %v63
    %535 = vmatprep.subr.mxu0 0.0
    %536 = vmatpush1.msra.mxu0 %v64
    %537 = vmatprep.subr.mxu0 0.0
    %538 = vmatpush1.msra.mxu0 %v65
    %539 = vmatprep.subr.mxu0 0.0
    %540 = vmatpush1.msra.mxu0 %v66
    %541 = vmatprep.subr.mxu0 0.0
    %542 = vmatpush1.msra.mxu0 0.0
    %543 = vmatprep.subr.mxu0 0.0
    %544 = vmatpush1.msra.mxu0 0.0
    %545 = vmatprep.subr.mxu0 0.0
    %546 = vmatpush1.msra.mxu0 0.0
    %547 = vmatprep.subr.mxu0 0.0
    %548 = vmatpush1.msra.mxu0 0.0
    %549 = vmatprep.subr.mxu0 0.0
    %550 = vmatpush1.msra.mxu0 0.0
    %551 = vmatprep.subr.mxu0 0.0
    %552 = vmatpush1.msra.mxu0 0.0
    %553 = vmatprep.subr.mxu0 0.0
    %554 = vmatpush1.msra.mxu0 0.0
    %555 = vmatprep.subr.mxu0 0.0
    %556 = vmatpush1.msra.mxu0 0.0
    %557 = vmatprep.subr.mxu0 0.0
    %558 = vmatpush1.msra.mxu0 0.0
    %559 = vmatprep.subr.mxu0 0.0
    %560 = vmatpush1.msra.mxu0 0.0
    %561 = vmatprep.subr.mxu0 0.0
    %562 = vmatpush1.msra.mxu0 0.0
    %563 = vmatprep.subr.mxu0 0.0
    %564 = vmatpush1.msra.mxu0 0.0
    %565 = vmatprep.subr.mxu0 0.0
    %566 = vmatpush1.msra.mxu0 0.0
    %567 = vmatprep.subr.mxu0 0.0
    %568 = vmatpush1.msra.mxu0 0.0
    %569 = vmatprep.subr.mxu0 0.0
    %570 = vmatpush1.msra.mxu0 0.0
    %571 = vmatprep.subr.mxu0 0.0
    %572 = vmatpush1.msra.mxu0 0.0
    %573 = vmatprep.subr.mxu0 0.0
    %574 = vmatpush1.msra.mxu0 0.0
    %575 = vmatprep.subr.mxu0 0.0
    %576 = vmatpush1.msra.mxu0 0.0
    %577 = vmatprep.subr.mxu0 0.0
    %578 = vmatpush1.msra.mxu0 0.0
    %579 = vmatprep.subr.mxu0 0.0
    %580 = vmatpush1.msra.mxu0 0.0
    %581 = vmatprep.subr.mxu0 0.0
    %582 = vmatpush1.msra.mxu0 0.0
    %583 = vmatprep.subr.mxu0 0.0
    %584 = vmatpush1.msra.mxu0 0.0
    %585 = vmatprep.subr.mxu0 0.0
    %586 = vmatpush1.msra.mxu0 0.0
    %587 = vmatprep.subr.mxu0 0.0
    %588 = vmatpush1.msra.mxu0 0.0
    %589 = vmatprep.subr.mxu0 0.0
    %590 = vmatpush1.msra.mxu0 0.0
    %591 = vmatprep.subr.mxu0 0.0
    %592 = vmatpush1.msra.mxu0 0.0
    %593 = vmatprep.subr.mxu0 0.0
    %594 = vmatpush1.msra.mxu0 0.0
    %595 = vmatprep.subr.mxu0 0.0
    %596 = vmatpush1.msra.mxu0 0.0
    %597 = vmatprep.mubr.f32.mxu0 0.0
    %598 = vmatmul.mubr.f32.gmra.mrb[0].mxu0 %v531
    %v599 = vpop.f32.mrb[0].mxu0
    %v600 = vadd.f32 0.0, %v599
    %v601 = vpop.f32.mrb[0].mxu0
    %602 = vdwg.mxu0
    %v603 = vadd.f32 %v529, %v600
    %v604 = vtanh.pop %v603
    %v605 = vld [vmem:[#allocation7] sm:$0xff]
    %v606 = vld [vmem:[#allocation7 + $0x8] sm:$0xff]
    %v607 = vld [vmem:[#allocation7 + $0x10] sm:$0xff]
    %v608 = vld [vmem:[#allocation7 + $0x18] sm:$0xff]
    %v609 = vld [vmem:[%s3] sm:$0x1]
    %v611 = vlaneseq
    %v612 = vshrl.u32 %v611, 7
    %v613 = vsub.s32 0, %v612
    %v614 = vrot.slane %v609, %v613
    %v617 = vsel %vm67, %v604, 0
    %619 = vmatprep.subr.mxu0 0.0
    %620 = vmatpush1.msra.mxu0 %v605
    %621 = vmatprep.subr.mxu0 0.0
    %622 = vmatpush1.msra.mxu0 %v606
    %623 = vmatprep.subr.mxu0 0.0
    %624 = vmatpush1.msra.mxu0 %v607
    %625 = vmatprep.subr.mxu0 0.0
    %626 = vmatpush1.msra.mxu0 %v608
    %627 = vmatprep.subr.mxu0 0.0
    %628 = vmatpush1.msra.mxu0 0.0
    %629 = vmatprep.subr.mxu0 0.0
    %630 = vmatpush1.msra.mxu0 0.0
    %631 = vmatprep.subr.mxu0 0.0
    %632 = vmatpush1.msra.mxu0 0.0
    %633 = vmatprep.subr.mxu0 0.0
    %634 = vmatpush1.msra.mxu0 0.0
    %635 = vmatprep.subr.mxu0 0.0
    %636 = vmatpush1.msra.mxu0 0.0
    %637 = vmatprep.subr.mxu0 0.0
    %638 = vmatpush1.msra.mxu0 0.0
    %639 = vmatprep.subr.mxu0 0.0
    %640 = vmatpush1.msra.mxu0 0.0
    %641 = vmatprep.subr.mxu0 0.0
    %642 = vmatpush1.msra.mxu0 0.0
    %643 = vmatprep.subr.mxu0 0.0
    %644 = vmatpush1.msra.mxu0 0.0
    %645 = vmatprep.subr.mxu0 0.0
    %646 = vmatpush1.msra.mxu0 0.0
    %647 = vmatprep.subr.mxu0 0.0
    %648 = vmatpush1.msra.mxu0 0.0
    %649 = vmatprep.subr.mxu0 0.0
    %650 = vmatpush1.msra.mxu0 0.0
    %651 = vmatprep.subr.mxu0 0.0
    %652 = vmatpush1.msra.mxu0 0.0
    %653 = vmatprep.subr.mxu0 0.0
    %654 = vmatpush1.msra.mxu0 0.0
    %655 = vmatprep.subr.mxu0 0.0
    %656 = vmatpush1.msra.mxu0 0.0
    %657 = vmatprep.subr.mxu0 0.0
    %658 = vmatpush1.msra.mxu0 0.0
    %659 = vmatprep.subr.mxu0 0.0
    %660 = vmatpush1.msra.mxu0 0.0
    %661 = vmatprep.subr.mxu0 0.0
    %662 = vmatpush1.msra.mxu0 0.0
    %663 = vmatprep.subr.mxu0 0.0
    %664 = vmatpush1.msra.mxu0 0.0
    %665 = vmatprep.subr.mxu0 0.0
    %666 = vmatpush1.msra.mxu0 0.0
    %667 = vmatprep.subr.mxu0 0.0
    %668 = vmatpush1.msra.mxu0 0.0
    %669 = vmatprep.subr.mxu0 0.0
    %670 = vmatpush1.msra.mxu0 0.0
    %671 = vmatprep.subr.mxu0 0.0
    %672 = vmatpush1.msra.mxu0 0.0
    %673 = vmatprep.subr.mxu0 0.0
    %674 = vmatpush1.msra.mxu0 0.0
    %675 = vmatprep.subr.mxu0 0.0
    %676 = vmatpush1.msra.mxu0 0.0
    %677 = vmatprep.subr.mxu0 0.0
    %678 = vmatpush1.msra.mxu0 0.0
    %679 = vmatprep.subr.mxu0 0.0
    %680 = vmatpush1.msra.mxu0 0.0
    %681 = vmatprep.subr.mxu0 0.0
    %682 = vmatpush1.msra.mxu0 0.0
    %683 = vmatprep.mubr.f32.mxu0 0.0
    %684 = vmatmul.mubr.f32.gmra.mrb[0].mxu0 %v617
    %v685 = vpop.f32.mrb[0].mxu0
    %v686 = vadd.f32 %v614, %v685
    %v687 = vpop.f32.mrb[0].mxu0
    %688 = vdwg.mxu0
    %689 = vst [vmem:[#allocation8] sm:$0xff] %v686
    // Predicated region
    $region30: #{tpu_custom_call.1} parent=1 // pred_check
      _
    $region31: #{tpu_custom_call.1} parent=1 // pred_check_branch
      %691 = sbr.rel (0) target = $region33
    $region32: #{tpu_custom_call.1} parent=1 // pred_region
      %s693 = ssub.s32 128, 128
      %694 = vsyncadd [#allocation4], %s693
      %s696 = sshll.u32 [#allocation8], 4
      %s697 = int_to_ptr.vmem [resolvable:$true] %s696
      %699 = dma.vmem_to_hbm [thread:$0]  %s697, 128, %s4, [#allocation4]
    $region33: #{tpu_custom_call.1} parent=1 // pred_fallthru
      _
    // Predicated region
    $region34: #{tpu_custom_call.1} parent=1 // pred_check
      _
    $region35: #{tpu_custom_call.1} parent=1 // pred_check_branch
      %701 = sbr.rel (0) target = $region37
    $region36: #{tpu_custom_call.1} parent=1 // pred_region
      %702 = dma.done [#allocation4], 128
    $region37: #{tpu_custom_call.1} parent=1 // pred_fallthru
      _
    %703 = vsyncpa [#allocation3], 1
    %704 = vsyncpa [#allocation6], 1
    %705 = vsyncpa [#allocation4], 1

</llo_original>
